<compile_context>
chip_gen: v7x
topology: tpu7x:2x2x1
jax: 0.10.0
libtpu: 0.0.40
codegen_flags: <defaults>
</compile_context>

<pallas_src>
import jax
import jax.numpy as jnp
from jax.experimental import pallas as pl
from jax.experimental.pallas import tpu as pltpu

EPS = 1e-5  # torch.nn.GroupNorm default


def _groupnorm_kernel(x_ref, w_ref, b_ref, o_ref):
    # x_ref: (nb, 1, S, lanes)  -- nb batch rows of one group's flattened slab
    # w_ref, b_ref: (1, 1, S, lanes) -- per-element affine (pre-broadcast)
    xf = x_ref[...].astype(jnp.float32)
    inv_cnt = 1.0 / (xf.shape[2] * xf.shape[3])
    s1 = jnp.sum(xf, axis=(2, 3), keepdims=True)            # (nb, 1, 1, 1)
    s2 = jnp.sum(xf * xf, axis=(2, 3), keepdims=True)       # single pass
    mean = s1 * inv_cnt
    # E[x^2]-mean^2 in f32; clamp guards tiny negative from cancellation.
    var = jnp.maximum(s2 * inv_cnt - mean * mean, 0.0)
    inv = jax.lax.rsqrt(var + EPS)                           # EUP slot
    scale = inv * w_ref[...].astype(jnp.float32)             # (nb, 1, S, lanes)
    shift = b_ref[...].astype(jnp.float32) - mean * scale
    o_ref[...] = (xf * scale + shift).astype(o_ref.dtype)


def _vmem_budgets():
    """Per-generation scoped-VMEM limit and per-step block budget (bytes)."""
    try:
        cap = pltpu.get_tpu_info().vmem_capacity_bytes
    except Exception:
        cap = 64 * 1024 * 1024  # conservative (v7x per-core) fallback
    vmem_limit = min(96 * 1024 * 1024, int(cap * 0.8))
    # Live set per step ~= 2 in + 2 out pipeline buffers + ~2 f32 temporaries
    # -> size one f32 block at ~1/8 of the scoped limit.
    block_budget = vmem_limit // 8
    return vmem_limit, block_budget


def _pick_nb(n, slab_f32_bytes, block_budget, n_groups):
    """Batch rows per grid step: fill the budget, no divisor requirement."""
    nb = max(1, min(n, block_budget // max(slab_f32_bytes, 1)))
    steps = pl.cdiv(n, nb)
    nb = pl.cdiv(n, steps)          # rebalance so the last block isn't nearly empty
    steps = pl.cdiv(n, nb)
    # v7x megacore: make sure both TensorCores get at least one grid step.
    if n_groups * steps < 2 and n >= 2:
        nb = pl.cdiv(n, 2)
        steps = pl.cdiv(n, nb)
    return nb, steps


def group_norm(x, weight, bias, n_groups=2):
    """GroupNorm forward.  x: (N, C, H, W); weight, bias: (C,)."""
    N, C, H, W = x.shape
    G = n_groups
    assert C % G == 0, "channels must be divisible by n_groups"
    cg = C // G
    HW = H * W
    L = cg * HW  # elements per (batch, group) slab

    # Dense layout: lane dim a multiple of 128 whenever the slab allows.
    if L % 128 == 0:
        S, lanes = L // 128, 128
    else:
        S, lanes = cg, HW  # fallback: lane axis = full spatial extent
        # TODO(synk): pad + mask to a 128-multiple lane dim for awkward H*W.

    x4 = x.reshape(N, G, S, lanes)                      # free contiguous reshape
    w4 = jnp.broadcast_to(weight.reshape(G, 1, cg, 1),
                          (G, 1, cg, HW)).reshape(G, 1, S, lanes)
    b4 = jnp.broadcast_to(bias.reshape(G, 1, cg, 1),
                          (G, 1, cg, HW)).reshape(G, 1, S, lanes)

    vmem_limit, block_budget = _vmem_budgets()
    slab_f32 = L * 4
    # TODO(synk): when one slab exceeds the budget (huge cg*H*W), switch to a
    # two-pass tiled-spatial kernel (stats accumulated over an "arbitrary" axis).
    nb, steps = _pick_nb(N, slab_f32, block_budget, G)

    itemsize = jnp.dtype(x.dtype).itemsize
    cost = pl.CostEstimate(
        flops=6 * N * C * H * W,
        transcendentals=N * G,
        bytes_accessed=2 * N * C * H * W * itemsize + 2 * C * HW * 4,
    )

    out = pl.pallas_call(
        _groupnorm_kernel,
        out_shape=jax.ShapeDtypeStruct((N, G, S, lanes), x.dtype),
        grid_spec=pltpu.PrefetchScalarGridSpec(
            num_scalar_prefetch=0,
            grid=(G, steps),  # group OUTER: affine blocks stay VMEM-resident
            in_specs=[
                pl.BlockSpec((nb, 1, S, lanes), lambda g, n: (n, g, 0, 0)),
                pl.BlockSpec((1, 1, S, lanes), lambda g, n: (g, 0, 0, 0)),
                pl.BlockSpec((1, 1, S, lanes), lambda g, n: (g, 0, 0, 0)),
            ],
            out_specs=pl.BlockSpec((nb, 1, S, lanes), lambda g, n: (n, g, 0, 0)),
        ),
        compiler_params=pltpu.CompilerParams(
            dimension_semantics=("parallel", "parallel"),
            vmem_limit_bytes=vmem_limit,
        ),
        cost_estimate=cost,
    )(x4, w4, b4)

    return out.reshape(N, C, H, W)


def group_norm_reference(x, weight, bias, n_groups=2):
    """Plain-JAX reference matching torch.nn.GroupNorm semantics."""
    N, C, H, W = x.shape
    xg = x.reshape(N, n_groups, -1).astype(jnp.float32)
    mean = xg.mean(axis=-1, keepdims=True)
    var = ((xg - mean) ** 2).mean(axis=-1, keepdims=True)
    xn = (xg - mean) * jax.lax.rsqrt(var + EPS)
    xn = xn.reshape(N, C, H, W)
    return (xn * weight.reshape(1, C, 1, 1) + bias.reshape(1, C, 1, 1)).astype(x.dtype)


if __name__ == "__main__":
    key = jax.random.PRNGKey(0)
    kx, kw, kb = jax.random.split(key, 3)

    N, C, H, W = 2, 4, 16, 16
    n_groups = 2  # module default

    x = jax.random.normal(kx, (N, C, H, W), dtype=jnp.float32)
    # Deterministic perturbations so the affine path is exercised
    # (PyTorch default init is ones/zeros).
    weight = 1.0 + 0.1 * jax.random.normal(kw, (C,), dtype=jnp.float32)
    bias = 0.1 * jax.random.normal(kb, (C,), dtype=jnp.float32)

    out = group_norm(x, weight, bias, n_groups=n_groups)
    out = jax.block_until_ready(out)

    ref = group_norm_reference(x, weight, bias, n_groups=n_groups)
    assert out.shape == (N, C, H, W)
    assert jnp.allclose(out, ref, atol=1e-5, rtol=1e-5), "mismatch vs reference"

    print("KERNEL_OK")
</pallas_src>

<mosaic_0001>
module attributes {stable_mosaic.version = 11 : i64} {
  func.func @_groupnorm_kernel(%arg0: i32, %arg1: i32, %arg2: memref<2x1x4x128xf32, #tpu.memory_space<vmem>>, %arg3: memref<1x1x4x128xf32, #tpu.memory_space<vmem>>, %arg4: memref<1x1x4x128xf32, #tpu.memory_space<vmem>>, %arg5: memref<2x1x4x128xf32, #tpu.memory_space<vmem>>) attributes {dimension_semantics = [#tpu.dimension_semantics<parallel>, #tpu.dimension_semantics<parallel>], iteration_bounds = array<i64: 2, 1>, scalar_prefetch = 0 : i64, scratch_operands = 0 : i64, tpu.core_type = #tpu.core_type<tc>, window_params = [{transform_indices = @transform_0, window_bounds = array<i64: 2, 1, 4, 128>}, {transform_indices = @transform_1, window_bounds = array<i64: 1, 1, 4, 128>}, {transform_indices = @transform_2, window_bounds = array<i64: 1, 1, 4, 128>}, {transform_indices = @transform_3, window_bounds = array<i64: 2, 1, 4, 128>}]} {
    %c0 = arith.constant 0 : index
    %c0_0 = arith.constant 0 : index
    %c0_1 = arith.constant 0 : index
    %c0_2 = arith.constant 0 : index
    %0 = vector.load %arg2[%c0, %c0_0, %c0_1, %c0_2] : memref<2x1x4x128xf32, #tpu.memory_space<vmem>>, vector<2x1x4x128xf32>
    %cst = arith.constant dense<0.000000e+00> : vector<2x1xf32>
    %1 = vector.multi_reduction <add>, %0, %cst [2, 3] : vector<2x1x4x128xf32> to vector<2x1xf32>
    %2 = vector.shape_cast %1 : vector<2x1xf32> to vector<2x1x1x1xf32>
    %3 = arith.mulf %0, %0 : vector<2x1x4x128xf32>
    %cst_3 = arith.constant dense<0.000000e+00> : vector<2x1xf32>
    %4 = vector.multi_reduction <add>, %3, %cst_3 [2, 3] : vector<2x1x4x128xf32> to vector<2x1xf32>
    %5 = vector.shape_cast %4 : vector<2x1xf32> to vector<2x1x1x1xf32>
    %cst_4 = arith.constant 0.001953125 : f32
    %6 = vector.broadcast %cst_4 : f32 to vector<2x1x1x1xf32>
    %7 = arith.mulf %2, %6 : vector<2x1x1x1xf32>
    %cst_5 = arith.constant 0.001953125 : f32
    %8 = vector.broadcast %cst_5 : f32 to vector<2x1x1x1xf32>
    %9 = arith.mulf %5, %8 : vector<2x1x1x1xf32>
    %10 = arith.mulf %7, %7 : vector<2x1x1x1xf32>
    %11 = arith.subf %9, %10 : vector<2x1x1x1xf32>
    %cst_6 = arith.constant 0.000000e+00 : f32
    %12 = vector.broadcast %cst_6 : f32 to vector<2x1x1x1xf32>
    %13 = arith.maximumf %11, %12 : vector<2x1x1x1xf32>
    %cst_7 = arith.constant 9.99999974E-6 : f32
    %14 = vector.broadcast %cst_7 : f32 to vector<2x1x1x1xf32>
    %15 = arith.addf %13, %14 : vector<2x1x1x1xf32>
    %16 = math.rsqrt %15 : vector<2x1x1x1xf32>
    %c0_8 = arith.constant 0 : index
    %c0_9 = arith.constant 0 : index
    %c0_10 = arith.constant 0 : index
    %c0_11 = arith.constant 0 : index
    %17 = vector.load %arg3[%c0_8, %c0_9, %c0_10, %c0_11] : memref<1x1x4x128xf32, #tpu.memory_space<vmem>>, vector<1x1x4x128xf32>
    %18 = vector.broadcast %16 : vector<2x1x1x1xf32> to vector<2x1x4x128xf32>
    %19 = vector.broadcast %17 : vector<1x1x4x128xf32> to vector<2x1x4x128xf32>
    %20 = arith.mulf %18, %19 : vector<2x1x4x128xf32>
    %c0_12 = arith.constant 0 : index
    %c0_13 = arith.constant 0 : index
    %c0_14 = arith.constant 0 : index
    %c0_15 = arith.constant 0 : index
    %21 = vector.load %arg4[%c0_12, %c0_13, %c0_14, %c0_15] : memref<1x1x4x128xf32, #tpu.memory_space<vmem>>, vector<1x1x4x128xf32>
    %22 = vector.broadcast %7 : vector<2x1x1x1xf32> to vector<2x1x4x128xf32>
    %23 = arith.mulf %22, %20 : vector<2x1x4x128xf32>
    %24 = vector.broadcast %21 : vector<1x1x4x128xf32> to vector<2x1x4x128xf32>
    %25 = arith.subf %24, %23 : vector<2x1x4x128xf32>
    %26 = arith.mulf %0, %20 : vector<2x1x4x128xf32>
    %27 = arith.addf %26, %25 : vector<2x1x4x128xf32>
    %c0_16 = arith.constant 0 : index
    %c0_17 = arith.constant 0 : index
    %c0_18 = arith.constant 0 : index
    %c0_19 = arith.constant 0 : index
    %28 = vector.load %arg5[%c0_16, %c0_17, %c0_18, %c0_19] : memref<2x1x4x128xf32, #tpu.memory_space<vmem>>, vector<2x1x4x128xf32>
    tpu.vector_store %arg5[%c0_16, %c0_17, %c0_18, %c0_19], %27 {strides = array<i32>} : memref<2x1x4x128xf32, #tpu.memory_space<vmem>>, vector<2x1x4x128xf32>,
    return
  }
  func.func @transform_0(%arg0: i32, %arg1: i32) -> (i32, i32, i32, i32) {
    %c0_i32 = arith.constant 0 : i32
    %c0_i32_0 = arith.constant 0 : i32
    %c0_i32_1 = arith.constant 0 : i32
    return %arg1, %arg0, %c0_i32, %c0_i32_0 : i32, i32, i32, i32
  }
  func.func @transform_1(%arg0: i32, %arg1: i32) -> (i32, i32, i32, i32) {
    %c0_i32 = arith.constant 0 : i32
    %c0_i32_0 = arith.constant 0 : i32
    %c0_i32_1 = arith.constant 0 : i32
    %c0_i32_2 = arith.constant 0 : i32
    return %arg0, %c0_i32, %c0_i32_0, %c0_i32_1 : i32, i32, i32, i32
  }
  func.func @transform_2(%arg0: i32, %arg1: i32) -> (i32, i32, i32, i32) {
    %c0_i32 = arith.constant 0 : i32
    %c0_i32_0 = arith.constant 0 : i32
    %c0_i32_1 = arith.constant 0 : i32
    %c0_i32_2 = arith.constant 0 : i32
    return %arg0, %c0_i32, %c0_i32_0, %c0_i32_1 : i32, i32, i32, i32
  }
  func.func @transform_3(%arg0: i32, %arg1: i32) -> (i32, i32, i32, i32) {
    %c0_i32 = arith.constant 0 : i32
    %c0_i32_0 = arith.constant 0 : i32
    %c0_i32_1 = arith.constant 0 : i32
    return %arg1, %arg0, %c0_i32, %c0_i32_0 : i32, i32, i32, i32
  }
}

</mosaic_0001>

<llo_original>
// kernel: tpu_custom_call.1
$region0: #{tpu_custom_call.1}
  #allocation0 [shape = 'u32[]', space=smem, size = 0x4, offset = 0x4, fixed_abs, tag = 'smem constant byte address 0x4 - core index']
  #allocation1 [shape = 'u32[144,128]{1,0:T(1,128)}', space=vmem, size = 0x12000, scoped, tag = 'internal scratch']
  %s0 = inlined_call_operand.hbm [shape: f32[2,2,4,128], index: 0, kind: input, shape index: {}]
  %s1 = inlined_call_operand.hbm [shape: f32[2,1,4,128], index: 1, kind: input, shape index: {}]
  %s2 = inlined_call_operand.hbm [shape: f32[2,1,4,128], index: 2, kind: input, shape index: {}]
  %s3 = inlined_call_operand.hbm [shape: f32[2,2,4,128], index: 3, kind: output, shape index: {}]
  %s4 = sld [smem:[#allocation0]]
  $region57: #{tpu_custom_call.1} parent=0
    _
  %s6 = ssub.s32 1, %s4
  %s7 = scalar_select 0, %s6, %s4
  $region1: #{tpu_custom_call.1} parent=0
    #allocation2 [shape = 'u8[8192]{0}', space=vmem, size = 0x2000, scoped, tag = 'input window, operand 0']
    #allocation3 [shape = 's32[2]{0}', space=sflag, size = 0x8, scoped, tag = 'scoped memory for tpu_custom_call.1']
    #allocation4 [shape = 's32[2]{0}', space=sflag, size = 0x8, scoped, tag = 'scoped memory for tpu_custom_call.1']
    #allocation5 [shape = 'u8[4096]{0}', space=vmem, size = 0x1000, scoped, tag = 'input window, operand 1']
    #allocation6 [shape = 's32[2]{0}', space=sflag, size = 0x8, scoped, tag = 'scoped memory for tpu_custom_call.1']
    #allocation7 [shape = 'u8[4096]{0}', space=vmem, size = 0x1000, scoped, tag = 'input window, operand 2']
    #allocation8 [shape = 'u8[8192]{0}', space=vmem, size = 0x2000, scoped, tag = 'output window, operand 0']
    %8 = vsyncpa [#allocation3], 0
    %s9 = scalar_lea.sflag [#allocation3], 1
    %10 = vsyncpa %s9, 0
    %11 = vsyncpa [#allocation6], 0
    %s12 = scalar_lea.sflag [#allocation6], 1
    %13 = vsyncpa %s12, 0
    %14 = vsyncpa [#allocation4], 0
    %s15 = scalar_lea.sflag [#allocation4], 1
    %16 = vsyncpa %s15, 0
    loop: start=0, step=1, limit=4
    $region2: #{tpu_custom_call.1} parent=1 // loop_pre_header
      _
    $region3: #{tpu_custom_call.1} parent=1 // loop_header
      %s18 = sphi 0, %s22
      %p19 = scmp.ge.s32.totalorder %s18, 4
      %s25 = sphi 0, %s37
      %s26 = sphi 0, %s33
      %s27 = sphi 0, %s25
      %s28 = sphi 0, %s26
      %s29 = sphi 0, %s27
      %s30 = sphi 0, %s28
      %s42 = sphi 0, %s44
      %s45 = sphi 0, %s42
      %s46 = sphi 0, %s45
      %s62 = sphi 0, %s46
      %s68 = sphi 0, %s70
      %s71 = sphi 0, %s68
      %s72 = sphi 0, %s71
      %s88 = sphi 0, %s72
      %s94 = sphi 0, %s96
      %s97 = sphi 0, %s94
      %s98 = sphi 0, %s97
      %s114 = sphi 0, %s98
      %s122 = sphi 0, %s124
      %s125 = sphi 0, %s122
      %s126 = sphi 0, %s125
      %s142 = sphi 0, %s126
    $region4: #{tpu_custom_call.1} parent=1 // loop_header_branch
      %21 = sbr.rel (%p19) target = $region8
    $region5: #{tpu_custom_call.1} parent=1 // loop_body
      %s23 = ssub.s32 %s18, 1
      %s24 = ssub.s32 %s18, 2
      %s31 = sadd.s32 1, %s26
      %p32 = scmp.ge.s32.totalorder %s31, 1
      %s33 = scalar_select %p32, 0, %s31
      %s34 = sadd.s32 1, %s25
      %s35 = scalar_select %p32, %s34, %s25
      %p36 = scmp.ge.s32.totalorder %s35, 2
      %s37 = scalar_select %p36, 0, %s35
      %s38 = ssub.s32 %s26, %s33
      %s39 = ssub.s32 %s25, %s37
      %s40 = sor.u32 %s38, %s39
      %p41 = scmp.eq.s32.totalorder %s40, 0
      %s43 = sadd.s32 %s42, 1
      %s44 = scalar_select %p41, %s42, %s43
      %p47 = pneg %p41
      %p48 = scmp.eq.s32.totalorder %s18, 1
      %p49 = por %p47, %p48
      %p50 = scmp.ne.s32.totalorder %s42, %s45
      %p51 = scmp.eq.s32.totalorder %s18, 0
      %p52 = por %p50, %p51
      %p53 = scmp.ne.s32.totalorder %s42, %s45
      %p54 = scmp.eq.s32.totalorder %s23, 1
      %p55 = por %p53, %p54
      %p56 = scmp.ne.s32.totalorder %s45, %s46
      %p57 = scmp.eq.s32.totalorder %s23, 0
      %p58 = por %p56, %p57
      %p59 = scmp.ne.s32.totalorder %s45, %s46
      %p60 = scmp.eq.s32.totalorder %s24, 1
      %p61 = por %p59, %p60
      %p63 = scmp.ne.s32.totalorder %s46, %s62
      %p64 = scmp.eq.s32.totalorder %s24, 0
      %p65 = por %p63, %p64
      %s66 = ssub.s32 %s25, %s37
      %p67 = scmp.eq.s32.totalorder %s66, 0
      %s69 = sadd.s32 %s68, 1
      %s70 = scalar_select %p67, %s68, %s69
      %p73 = pneg %p67
      %p74 = scmp.eq.s32.totalorder %s18, 1
      %p75 = por %p73, %p74
      %p76 = scmp.ne.s32.totalorder %s68, %s71
      %p77 = scmp.eq.s32.totalorder %s18, 0
      %p78 = por %p76, %p77
      %p79 = scmp.ne.s32.totalorder %s68, %s71
      %p80 = scmp.eq.s32.totalorder %s23, 1
      %p81 = por %p79, %p80
      %p82 = scmp.ne.s32.totalorder %s71, %s72
      %p83 = scmp.eq.s32.totalorder %s23, 0
      %p84 = por %p82, %p83
      %p85 = scmp.ne.s32.totalorder %s71, %s72
      %p86 = scmp.eq.s32.totalorder %s24, 1
      %p87 = por %p85, %p86
      %p89 = scmp.ne.s32.totalorder %s72, %s88
      %p90 = scmp.eq.s32.totalorder %s24, 0
      %p91 = por %p89, %p90
      %s92 = ssub.s32 %s25, %s37
      %p93 = scmp.eq.s32.totalorder %s92, 0
      %s95 = sadd.s32 %s94, 1
      %s96 = scalar_select %p93, %s94, %s95
      %p99 = pneg %p93
      %p100 = scmp.eq.s32.totalorder %s18, 1
      %p101 = por %p99, %p100
      %p102 = scmp.ne.s32.totalorder %s94, %s97
      %p103 = scmp.eq.s32.totalorder %s18, 0
      %p104 = por %p102, %p103
      %p105 = scmp.ne.s32.totalorder %s94, %s97
      %p106 = scmp.eq.s32.totalorder %s23, 1
      %p107 = por %p105, %p106
      %p108 = scmp.ne.s32.totalorder %s97, %s98
      %p109 = scmp.eq.s32.totalorder %s23, 0
      %p110 = por %p108, %p109
      %p111 = scmp.ne.s32.totalorder %s97, %s98
      %p112 = scmp.eq.s32.totalorder %s24, 1
      %p113 = por %p111, %p112
      %p115 = scmp.ne.s32.totalorder %s98, %s114
      %p116 = scmp.eq.s32.totalorder %s24, 0
      %p117 = por %p115, %p116
      %s118 = ssub.s32 %s26, %s33
      %s119 = ssub.s32 %s25, %s37
      %s120 = sor.u32 %s118, %s119
      %p121 = scmp.eq.s32.totalorder %s120, 0
      %s123 = sadd.s32 %s122, 1
      %s124 = scalar_select %p121, %s122, %s123
      %p127 = pneg %p121
      %p128 = scmp.eq.s32.totalorder %s18, 1
      %p129 = por %p127, %p128
      %p130 = scmp.ne.s32.totalorder %s122, %s125
      %p131 = scmp.eq.s32.totalorder %s18, 0
      %p132 = por %p130, %p131
      %p133 = scmp.ne.s32.totalorder %s122, %s125
      %p134 = scmp.eq.s32.totalorder %s23, 1
      %p135 = por %p133, %p134
      %p136 = scmp.ne.s32.totalorder %s125, %s126
      %p137 = scmp.eq.s32.totalorder %s23, 0
      %p138 = por %p136, %p137
      %p139 = scmp.ne.s32.totalorder %s125, %s126
      %p140 = scmp.eq.s32.totalorder %s24, 1
      %p141 = por %p139, %p140
      %p143 = scmp.ne.s32.totalorder %s126, %s142
      %p144 = scmp.eq.s32.totalorder %s24, 0
      %p145 = por %p143, %p144
      %p146 = scmp.le.s32.totalorder 1, %s18
      %p147 = scmp.lt.s32.totalorder %s18, 3
      %p148 = pnand %p146, %p147
      %p149 = pneg %p148
      // Predicated region
      $region9: #{tpu_custom_call.1} parent=5 // pred_check
        _
      $region10: #{tpu_custom_call.1} parent=5 // pred_check_branch
        %151 = sbr.rel (%p148) target = $region12
      $region11: #{tpu_custom_call.1} parent=5 // pred_region
        %s152 = ssub.s32 %s18, 1
      $region12: #{tpu_custom_call.1} parent=5 // pred_fallthru
        _
      %p153 = scmp.lt.s32.totalorder %s18, 2
      // Predicated region
      $region13: #{tpu_custom_call.1} parent=5 // pred_check
        %p154 = pneg %p153
      $region14: #{tpu_custom_call.1} parent=5 // pred_check_branch
        %156 = sbr.rel (%p154) target = $region16
      $region15: #{tpu_custom_call.1} parent=5 // pred_region
        // Predicated region
        $region17: #{tpu_custom_call.1} parent=15 // pred_check
          %p157 = pneg %p52
        $region18: #{tpu_custom_call.1} parent=15 // pred_check_branch
          %159 = sbr.rel (%p157) target = $region20
        $region19: #{tpu_custom_call.1} parent=15 // pred_region
          %s160 = sand.u32 %s42, 1
          %s161 = scalar_lea.sflag [#allocation3], %s160
          %s162 = sand.u32 %s42, 1
          %s163 = smul.addr %s162, 8
          %s164 = scalar_lea.vmem [#allocation2], %s163
          %s165 = smul.u32 2, %s26
          %s167 = ssub.s32 128, 128
          %168 = vsyncadd %s161, %s167
          %s169 = smul.addr %s165, 2
          %s170 = sadd.s32 %s25, %s169
          %s171 = smul.addr %s170, 64
          %s172 = scalar_lea.hbm %s0, %s171
          %s173 = sshll.u32 %s164, 4
          %s174 = int_to_ptr.vmem [resolvable:$true] %s173
          %179 = dma.hbm_to_vmem [thread:$0]  %s172, 128, %s174, %s161, 128, 64, 4
        $region20: #{tpu_custom_call.1} parent=15 // pred_fallthru
          _
        // Predicated region
        $region21: #{tpu_custom_call.1} parent=15 // pred_check
          %p180 = pneg %p78
        $region22: #{tpu_custom_call.1} parent=15 // pred_check_branch
          %182 = sbr.rel (%p180) target = $region24
        $region23: #{tpu_custom_call.1} parent=15 // pred_region
          %s183 = sand.u32 %s18, 1
          %s184 = scalar_lea.sflag [#allocation6], %s183
          %s185 = sand.u32 %s68, 1
          %s186 = smul.addr %s185, 4
          %s187 = scalar_lea.vmem [#allocation5], %s186
          %s189 = ssub.s32 64, 64
          %190 = vsyncadd %s184, %s189
          %s191 = smul.addr %s25, 64
          %s192 = scalar_lea.hbm %s1, %s191
          %s194 = sshll.u32 %s187, 4
          %s195 = int_to_ptr.vmem [resolvable:$true] %s194
          %197 = dma.hbm_to_vmem [thread:$0]  %s192, 64, %s195, %s184
        $region24: #{tpu_custom_call.1} parent=15 // pred_fallthru
          _
        // Predicated region
        $region25: #{tpu_custom_call.1} parent=15 // pred_check
          %p198 = pneg %p104
        $region26: #{tpu_custom_call.1} parent=15 // pred_check_branch
          %200 = sbr.rel (%p198) target = $region28
        $region27: #{tpu_custom_call.1} parent=15 // pred_region
          %s201 = sand.u32 %s18, 1
          %s202 = scalar_lea.sflag [#allocation6], %s201
          %s203 = sand.u32 %s94, 1
          %s204 = smul.addr %s203, 4
          %s205 = scalar_lea.vmem [#allocation7], %s204
          %s207 = ssub.s32 64, 64
          %208 = vsyncadd %s202, %s207
          %s209 = smul.addr %s25, 64
          %s210 = scalar_lea.hbm %s2, %s209
          %s212 = sshll.u32 %s205, 4
          %s213 = int_to_ptr.vmem [resolvable:$true] %s212
          %215 = dma.hbm_to_vmem [thread:$0]  %s210, 64, %s213, %s202
        $region28: #{tpu_custom_call.1} parent=15 // pred_fallthru
          _
      $region16: #{tpu_custom_call.1} parent=5 // pred_fallthru
        _
      %p216 = scmp.le.s32.totalorder 1, %s18
      %p217 = scmp.lt.s32.totalorder %s18, 3
      %p218 = pnand %p216, %p217
      %p219 = pneg %p218
      // Predicated region
      $region29: #{tpu_custom_call.1} parent=5 // pred_check
        _
      $region30: #{tpu_custom_call.1} parent=5 // pred_check_branch
        %221 = sbr.rel (%p218) target = $region32
      $region31: #{tpu_custom_call.1} parent=5 // pred_region
        %s222 = ssub.s32 %s18, 1
        %s223 = sand.u32 %s45, 1
        %s224 = scalar_lea.sflag [#allocation3], %s223
        %s225 = sand.u32 %s45, 1
        %s226 = smul.addr %s225, 8
        %s227 = scalar_lea.vmem [#allocation2], %s226
        // Predicated region
        $region33: #{tpu_custom_call.1} parent=31 // pred_check
          %p228 = pneg %p58
        $region34: #{tpu_custom_call.1} parent=31 // pred_check_branch
          %230 = sbr.rel (%p228) target = $region36
        $region35: #{tpu_custom_call.1} parent=31 // pred_region
          %231 = dma.done %s224, 128
        $region36: #{tpu_custom_call.1} parent=31 // pred_fallthru
          _
        %s232 = sand.u32 %s23, 1
        %s233 = scalar_lea.sflag [#allocation6], %s232
        %s234 = sand.u32 %s71, 1
        %s235 = smul.addr %s234, 4
        %s236 = scalar_lea.vmem [#allocation5], %s235
        // Predicated region
        $region37: #{tpu_custom_call.1} parent=31 // pred_check
          %p237 = pneg %p84
        $region38: #{tpu_custom_call.1} parent=31 // pred_check_branch
          %239 = sbr.rel (%p237) target = $region40
        $region39: #{tpu_custom_call.1} parent=31 // pred_region
          %240 = dma.done %s233, 64
        $region40: #{tpu_custom_call.1} parent=31 // pred_fallthru
          _
        %s241 = sand.u32 %s23, 1
        %s242 = scalar_lea.sflag [#allocation6], %s241
        %s243 = sand.u32 %s97, 1
        %s244 = smul.addr %s243, 4
        %s245 = scalar_lea.vmem [#allocation7], %s244
        // Predicated region
        $region41: #{tpu_custom_call.1} parent=31 // pred_check
          %p246 = pneg %p110
        $region42: #{tpu_custom_call.1} parent=31 // pred_check_branch
          %248 = sbr.rel (%p246) target = $region44
        $region43: #{tpu_custom_call.1} parent=31 // pred_region
          %249 = dma.done %s242, 64
        $region44: #{tpu_custom_call.1} parent=31 // pred_fallthru
          _
        %s250 = sand.u32 %s45, 1
        %s251 = scalar_lea.sflag [#allocation3], %s250
        %s252 = sand.u32 %s45, 1
        %s253 = smul.addr %s252, 8
        %s254 = scalar_lea.vmem [#allocation2], %s253
        %p255 = pneg %p58
        %p256 = pneg %p55
        %s257 = sand.u32 %s23, 1
        %s258 = scalar_lea.sflag [#allocation6], %s257
        %s259 = sand.u32 %s71, 1
        %s260 = smul.addr %s259, 4
        %s261 = scalar_lea.vmem [#allocation5], %s260
        %p262 = pneg %p84
        %p263 = pneg %p81
        %s264 = sand.u32 %s23, 1
        %s265 = scalar_lea.sflag [#allocation6], %s264
        %s266 = sand.u32 %s97, 1
        %s267 = smul.addr %s266, 4
        %s268 = scalar_lea.vmem [#allocation7], %s267
        %p269 = pneg %p110
        %p270 = pneg %p107
        %p271 = pneg %p138
        %p272 = pneg %p135
        %s273 = sand.u32 %s125, 1
        %s274 = scalar_lea.sflag [#allocation4], %s273
        %s275 = sand.u32 %s125, 1
        %s276 = smul.addr %s275, 8
        %s277 = scalar_lea.vmem [#allocation8], %s276
        %s278 = smul.u32 2, %s28
        %s279 = smul.u32 2, %s28
        %v280 = vld [vmem:[%s227] sm:$0xf]
        %v281 = vld [vmem:[%s227 + $0x4] sm:$0xf]
        %vm282 = vcmask 1043456
        %v283 = vsel %vm282, %v280, 0.0
        %284 = vadd.xlane.f32.xlu0 %v283
        %v285 = vpop.xlane.xlu0 %284
        %v286 = vrot.slane %v285, 4
        %v287 = vadd.f32 %v285, %v286
        %v288 = vrot.slane %v287, 2
        %v289 = vadd.f32 %v287, %v288
        %v290 = vrot.slane %v289, 1
        %v291 = vadd.f32 %v289, %v290
        %v292 = vsel %vm282, %v281, 0.0
        %293 = vadd.xlane.f32.xlu0 %v292
        %v294 = vpop.xlane.xlu0 %293
        %v295 = vrot.slane %v294, 4
        %v296 = vadd.f32 %v294, %v295
        %v297 = vrot.slane %v296, 2
        %v298 = vadd.f32 %v296, %v297
        %v299 = vrot.slane %v298, 1
        %v300 = vadd.f32 %v298, %v299
        %v301 = vmul.f32 %v280, %v280
        %v302 = vmul.f32 %v281, %v281
        %v303 = vsel %vm282, %v301, 0.0
        %304 = vadd.xlane.f32.xlu0 %v303
        %v305 = vpop.xlane.xlu0 %304
        %v306 = vrot.slane %v305, 4
        %v307 = vadd.f32 %v305, %v306
        %v308 = vrot.slane %v307, 2
        %v309 = vadd.f32 %v307, %v308
        %v310 = vrot.slane %v309, 1
        %v311 = vadd.f32 %v309, %v310
        %v312 = vsel %vm282, %v302, 0.0
        %313 = vadd.xlane.f32.xlu0 %v312
        %v314 = vpop.xlane.xlu0 %313
        %v315 = vrot.slane %v314, 4
        %v316 = vadd.f32 %v314, %v315
        %v317 = vrot.slane %v316, 2
        %v318 = vadd.f32 %v316, %v317
        %v319 = vrot.slane %v318, 1
        %v320 = vadd.f32 %v318, %v319
        %v321 = vmul.f32 %v291, 0.001953125
        %v322 = vmul.f32 %v300, 0.001953125
        %v323 = vmul.f32 %v311, 0.001953125
        %v324 = vmul.f32 %v320, 0.001953125
        %v325 = vmul.f32 %v321, %v321
        %v326 = vmul.f32 %v322, %v322
        %v327 = vsub.f32 %v323, %v325
        %v328 = vsub.f32 %v324, %v326
        %v329 = vmax.f32 %v327, 0.0
        %v330 = vmax.f32 %v328, 0.0
        %v331 = vadd.f32 %v329, 1e-05
        %v332 = vadd.f32 %v330, 1e-05
        %v333 = vrsqrt.pop %v331
        %v334 = vrsqrt.pop %v332
        %v335 = vld [vmem:[%s236] sm:$0xf]
        %v336 = vmul.f32 %v333, %v335
        %v337 = vmul.f32 %v334, %v335
        %v338 = vld [vmem:[%s245] sm:$0xf]
        %v339 = vmul.f32 %v321, %v336
        %v340 = vmul.f32 %v322, %v337
        %v341 = vsub.f32 %v338, %v339
        %v342 = vsub.f32 %v338, %v340
        %v343 = vmul.f32 %v280, %v336
        %v344 = vmul.f32 %v281, %v337
        %v345 = vadd.f32 %v343, %v341
        %v346 = vadd.f32 %v344, %v342
        %347 = vst [vmem:[%s277] sm:$0xf] %v345
        %348 = vst [vmem:[%s277 + $0x4] sm:$0xf] %v346
        %s349 = sand.u32 %s125, 1
        %s350 = scalar_lea.sflag [#allocation4], %s349
        %s351 = sand.u32 %s125, 1
        %s352 = smul.addr %s351, 8
        %s353 = scalar_lea.vmem [#allocation8], %s352
        // Predicated region
        $region45: #{tpu_custom_call.1} parent=31 // pred_check
          %p354 = pneg %p135
        $region46: #{tpu_custom_call.1} parent=31 // pred_check_branch
          %356 = sbr.rel (%p354) target = $region48
        $region47: #{tpu_custom_call.1} parent=31 // pred_region
          %s357 = smul.u32 2, %s28
          %s359 = ssub.s32 128, 128
          %360 = vsyncadd %s350, %s359
          %s361 = smul.addr %s357, 2
          %s362 = sadd.s32 %s27, %s361
          %s363 = smul.addr %s362, 64
          %s364 = scalar_lea.hbm %s3, %s363
          %s365 = sshll.u32 %s353, 4
          %s366 = int_to_ptr.vmem [resolvable:$true] %s365
          %371 = dma.vmem_to_hbm [thread:$0]  %s366, 128, %s364, %s350, 64, 128, 4
        $region48: #{tpu_custom_call.1} parent=31 // pred_fallthru
          _
      $region32: #{tpu_custom_call.1} parent=5 // pred_fallthru
        _
      %p372 = scmp.le.s32.totalorder 2, %s18
      // Predicated region
      $region49: #{tpu_custom_call.1} parent=5 // pred_check
        %p373 = pneg %p372
      $region50: #{tpu_custom_call.1} parent=5 // pred_check_branch
        %375 = sbr.rel (%p373) target = $region52
      $region51: #{tpu_custom_call.1} parent=5 // pred_region
        %s376 = ssub.s32 %s18, 2
        // Predicated region
        $region53: #{tpu_custom_call.1} parent=51 // pred_check
          %p377 = pneg %p141
        $region54: #{tpu_custom_call.1} parent=51 // pred_check_branch
          %379 = sbr.rel (%p377) target = $region56
        $region55: #{tpu_custom_call.1} parent=51 // pred_region
          %s380 = sand.u32 %s126, 1
          %s381 = scalar_lea.sflag [#allocation4], %s380
          %s382 = sand.u32 %s126, 1
          %s383 = smul.addr %s382, 8
          %s384 = scalar_lea.vmem [#allocation8], %s383
          %385 = dma.done %s381, 128
        $region56: #{tpu_custom_call.1} parent=51 // pred_fallthru
          _
      $region52: #{tpu_custom_call.1} parent=5 // pred_fallthru
        _
    $region6: #{tpu_custom_call.1} parent=1 // loop_footer
      %s22 = sadd.s32 1, %s18
    $region7: #{tpu_custom_call.1} parent=1 // loop_footer_branch
      %17 = sbr.rel target = $region3
    $region8: #{tpu_custom_call.1} parent=1 // loop_exit
      _
    %386 = vsyncpa [#allocation3], 1
    %s387 = scalar_lea.sflag [#allocation3], 1
    %388 = vsyncpa %s387, 1
    %389 = vsyncpa [#allocation6], 1
    %s390 = scalar_lea.sflag [#allocation6], 1
    %391 = vsyncpa %s390, 1
    %392 = vsyncpa [#allocation4], 1
    %s393 = scalar_lea.sflag [#allocation4], 1
    %394 = vsyncpa %s393, 1

</llo_original>
